<compile_context>
chip_gen: v5e
topology: v5e:2x2
jax: 0.10.0
libtpu: 0.0.40
codegen_flags: <defaults>
</compile_context>

<pallas_src>
import functools

import jax
import jax.numpy as jnp
from jax.experimental import pallas as pl
from jax.experimental.pallas import tpu as pltpu


def _round_up(x, m):
    return ((x + m - 1) // m) * m


# --------------------------------------------------------------------------
# Kernel A: W fully resident (single grid axis over row tiles).
# --------------------------------------------------------------------------
def _prenorm_linear_resident_kernel(x_ref, g_ref, b_ref, w_ref, bias_ref,
                                    o_ref, *, eps):
    # x_ref:    (TM, D)     tile of token rows
    # g_ref:    (1, D)      LayerNorm gamma
    # b_ref:    (1, D)      LayerNorm beta
    # w_ref:    (D, DoutP)  full (padded) Linear weight, resident in VMEM
    # bias_ref: (1, DoutP)  Linear bias
    # o_ref:    (TM, DoutP)
    x = x_ref[...].astype(jnp.float32)

    mean = jnp.mean(x, axis=-1, keepdims=True)
    centered = x - mean
    var = jnp.mean(centered * centered, axis=-1, keepdims=True)
    xn = centered * jax.lax.rsqrt(var + eps)
    y = xn * g_ref[...].astype(jnp.float32) + b_ref[...].astype(jnp.float32)

    out = jnp.dot(y.astype(w_ref.dtype), w_ref[...],
                  preferred_element_type=jnp.float32)
    out = out + bias_ref[...].astype(jnp.float32)
    o_ref[...] = out.astype(o_ref.dtype)


# --------------------------------------------------------------------------
# Kernel B: Dout tiled (j innermost), LayerNorm cached in VMEM scratch.
# --------------------------------------------------------------------------
def _prenorm_linear_tiled_kernel(x_ref, g_ref, b_ref, w_ref, bias_ref,
                                 o_ref, y_ref, *, eps):
    # x_ref:    (TM, D)   row tile (constant over j -> not re-DMA'd)
    # w_ref:    (D, TN)   weight tile for this Dout slice
    # bias_ref: (1, TN)
    # o_ref:    (TM, TN)
    # y_ref:    (TM, D)   VMEM scratch caching LayerNorm(x) in w.dtype
    @pl.when(pl.program_id(1) == 0)
    def _():
        x = x_ref[...].astype(jnp.float32)
        mean = jnp.mean(x, axis=-1, keepdims=True)
        centered = x - mean
        var = jnp.mean(centered * centered, axis=-1, keepdims=True)
        xn = centered * jax.lax.rsqrt(var + eps)
        y = xn * g_ref[...].astype(jnp.float32) + b_ref[...].astype(jnp.float32)
        y_ref[...] = y.astype(y_ref.dtype)

    out = jnp.dot(y_ref[...], w_ref[...], preferred_element_type=jnp.float32)
    out = out + bias_ref[...].astype(jnp.float32)
    o_ref[...] = out.astype(o_ref.dtype)


def _estimate_vmem_bytes(tm, D, tn, x_itemsize, w_itemsize, out_itemsize,
                         tiled):
    # Double-buffered pipeline buffers per array + rough f32 kernel-body temps.
    bufs = 2 * (tm * D * x_itemsize          # x tile
                + D * tn * w_itemsize        # W tile
                + tn * w_itemsize            # bias tile
                + 2 * D * 4                  # gamma + beta
                + tm * tn * out_itemsize)    # out tile
    temps = tm * D * 4 + tm * tn * 4         # f32 intermediates
    if tiled:
        temps += tm * D * w_itemsize         # y cache scratch
    return bufs + temps


def prenorm_linear(x, gamma, beta, w, bias, *, eps=1e-5, tile_rows=512,
                   max_resident_w_bytes=4 * 1024 * 1024):
    """x: (B, N, D); gamma/beta: (D,); w: (D, Dout); bias: (Dout,)."""
    B, N, D = x.shape
    Dout = w.shape[1]
    rows = B * N

    x_itemsize = x.dtype.itemsize
    w_itemsize = w.dtype.itemsize

    # ---- row tiling: large tiles (HBM-streaming-bound), multiple of 16 so
    # bf16 sublane packing is clean; pad the tail rows with zeros (LN of a
    # zero row is beta -> finite; sliced off at the end).
    tm = min(tile_rows, _round_up(rows, 16))

    # ---- choose path: keep W resident (no Dout grid axis) whenever the
    # padded weight fits a small VMEM budget; otherwise tile Dout with tn=256
    # (full MXU N width on v6e/v7x) and cache LayerNorm in scratch.
    Dout_p_resident = _round_up(Dout, 128)
    resident = D * Dout_p_resident * w_itemsize <= max_resident_w_bytes

    if resident:
        Dout_p = Dout_p_resident
        tn = Dout_p
    else:
        Dout_p = _round_up(Dout, 256)
        tn = 256

    # Shrink tm if the estimated footprint would blow past a conservative
    # per-kernel VMEM budget (covers v5e's 16 MiB scoped default).
    budget = 14 * 1024 * 1024
    while tm > 16 and _estimate_vmem_bytes(tm, D, tn, x_itemsize, w_itemsize,
                                           x_itemsize, not resident) > budget:
        tm //= 2
    tm = max(16, (tm // 16) * 16)

    rows_p = _round_up(rows, tm)

    # ---- host-side padding / reshapes ----
    x2 = x.reshape(rows, D)
    if rows_p != rows:
        x2 = jnp.pad(x2, ((0, rows_p - rows), (0, 0)))

    w_p, bias_p = w, bias
    if Dout_p != Dout:
        w_p = jnp.pad(w, ((0, 0), (0, Dout_p - Dout)))
        bias_p = jnp.pad(bias, ((0, Dout_p - Dout),))

    g2 = gamma.reshape(1, D)
    b2 = beta.reshape(1, D)
    bias2 = bias_p.reshape(1, Dout_p)

    n_row_tiles = rows_p // tm

    # ---- vmem limit: only override when the estimated need exceeds the
    # smallest scoped default (16 MiB, v5e); otherwise let the default stand.
    vmem_needed = _estimate_vmem_bytes(tm, D, tn, x_itemsize, w_itemsize,
                                       x_itemsize, not resident)
    compiler_kwargs = {}
    if vmem_needed > 16 * 1024 * 1024:
        compiler_kwargs["vmem_limit_bytes"] = min(
            int(vmem_needed * 1.25), 64 * 1024 * 1024)

    out_bytes = rows_p * Dout_p * x_itemsize
    x_bytes = x2.size * x_itemsize
    w_total_bytes = w_p.size * w_itemsize + bias2.size * bias2.dtype.itemsize

    if resident:
        kernel = functools.partial(_prenorm_linear_resident_kernel, eps=eps)
        grid = (n_row_tiles,)
        in_specs = [
            pl.BlockSpec((tm, D), lambda i: (i, 0)),       # x rows tile
            pl.BlockSpec((1, D), lambda i: (0, 0)),        # gamma
            pl.BlockSpec((1, D), lambda i: (0, 0)),        # beta
            pl.BlockSpec((D, Dout_p), lambda i: (0, 0)),   # full W (resident)
            pl.BlockSpec((1, Dout_p), lambda i: (0, 0)),   # bias
        ]
        out_specs = pl.BlockSpec((tm, Dout_p), lambda i: (i, 0))
        scratch_shapes = []
        dims = ("parallel",)
        bytes_accessed = x_bytes + w_total_bytes + out_bytes
    else:
        kernel = functools.partial(_prenorm_linear_tiled_kernel, eps=eps)
        grid = (n_row_tiles, Dout_p // tn)
        in_specs = [
            pl.BlockSpec((tm, D), lambda i, j: (i, 0)),    # x rows tile
            pl.BlockSpec((1, D), lambda i, j: (0, 0)),     # gamma
            pl.BlockSpec((1, D), lambda i, j: (0, 0)),     # beta
            pl.BlockSpec((D, tn), lambda i, j: (0, j)),    # W tile
            pl.BlockSpec((1, tn), lambda i, j: (0, j)),    # bias tile
        ]
        out_specs = pl.BlockSpec((tm, tn), lambda i, j: (i, j))
        scratch_shapes = [pltpu.VMEM((tm, D), w.dtype)]    # LayerNorm cache
        # Rows parallel (disjoint x reads across cores on v7x), Dout arbitrary.
        dims = ("parallel", "arbitrary")
        # W is re-streamed once per row tile with j innermost.
        bytes_accessed = x_bytes + w_total_bytes * n_row_tiles + out_bytes

    cost = pl.CostEstimate(
        flops=2 * rows_p * D * Dout_p,
        transcendentals=rows_p,            # one rsqrt per row
        bytes_accessed=bytes_accessed,
    )

    out = pl.pallas_call(
        kernel,
        out_shape=jax.ShapeDtypeStruct((rows_p, Dout_p), x.dtype),
        grid_spec=pltpu.PrefetchScalarGridSpec(
            num_scalar_prefetch=0,
            grid=grid,
            in_specs=in_specs,
            out_specs=out_specs,
            scratch_shapes=scratch_shapes,
        ),
        compiler_params=pltpu.CompilerParams(
            dimension_semantics=dims, **compiler_kwargs),
        cost_estimate=cost,
    )(x2, g2, b2, w_p, bias2)

    return out[:rows, :Dout].reshape(B, N, Dout)


def _reference(x, gamma, beta, w, bias, eps=1e-5):
    xf = x.astype(jnp.float32)
    mean = jnp.mean(xf, axis=-1, keepdims=True)
    var = jnp.mean((xf - mean) ** 2, axis=-1, keepdims=True)
    y = (xf - mean) * jax.lax.rsqrt(var + eps) * gamma + beta
    wf = w.astype(jnp.float32)
    bf = bias.astype(jnp.float32)
    return (y @ wf + bf).astype(x.dtype)


if __name__ == "__main__":
    key = jax.random.PRNGKey(0)
    kx, kw, kx2, kw2, kx3, kw3 = jax.random.split(key, 6)

    # ---- case 1: nominal small shapes (resident-W fast path) ----
    B, N, D, Dout = 2, 8, 32, 32
    x = jax.random.normal(kx, (B, N, D), dtype=jnp.float32)
    gamma = jnp.ones((D,), jnp.float32)
    beta = jnp.zeros((D,), jnp.float32)
    w = jax.random.normal(kw, (D, Dout), dtype=jnp.float32) * 0.02
    bias = jnp.zeros((Dout,), jnp.float32)

    out = jax.block_until_ready(prenorm_linear(x, gamma, beta, w, bias))
    ref = _reference(x, gamma, beta, w, bias)
    assert out.shape == (B, N, Dout)
    assert jnp.allclose(out, ref, atol=1e-4, rtol=1e-4), "mismatch (case 1)"

    # ---- case 2: ragged rows + Dout not 128-aligned (resident-W path) ----
    B2, N2, D2, Dout2 = 2, 7, 32, 96
    x2 = jax.random.normal(kx2, (B2, N2, D2), dtype=jnp.float32)
    gamma2 = jnp.ones((D2,), jnp.float32) * 1.1
    beta2 = jnp.full((D2,), 0.05, jnp.float32)
    w2 = jax.random.normal(kw2, (D2, Dout2), dtype=jnp.float32) * 0.02
    bias2 = jnp.linspace(-0.1, 0.1, Dout2, dtype=jnp.float32)

    out2 = jax.block_until_ready(prenorm_linear(x2, gamma2, beta2, w2, bias2))
    ref2 = _reference(x2, gamma2, beta2, w2, bias2)
    assert out2.shape == (B2, N2, Dout2)
    assert jnp.allclose(out2, ref2, atol=1e-4, rtol=1e-4), "mismatch (case 2)"

    # ---- case 3: force the tiled-Dout fallback (LN cached in scratch) ----
    B3, N3, D3, Dout3 = 2, 8, 32, 320
    x3 = jax.random.normal(kx3, (B3, N3, D3), dtype=jnp.float32)
    gamma3 = jnp.ones((D3,), jnp.float32) * 0.9
    beta3 = jnp.full((D3,), -0.02, jnp.float32)
    w3 = jax.random.normal(kw3, (D3, Dout3), dtype=jnp.float32) * 0.02
    bias3 = jnp.linspace(-0.05, 0.05, Dout3, dtype=jnp.float32)

    out3 = jax.block_until_ready(
        prenorm_linear(x3, gamma3, beta3, w3, bias3, max_resident_w_bytes=1))
    ref3 = _reference(x3, gamma3, beta3, w3, bias3)
    assert out3.shape == (B3, N3, Dout3)
    assert jnp.allclose(out3, ref3, atol=1e-4, rtol=1e-4), "mismatch (case 3)"

    print("KERNEL_OK")
</pallas_src>

<mosaic_0001>
module attributes {stable_mosaic.version = 11 : i64} {
  func.func @_prenorm_linear_resident_kernel(%arg0: i32, %arg1: memref<16x32xf32, #tpu.memory_space<vmem>>, %arg2: memref<1x32xf32, #tpu.memory_space<vmem>>, %arg3: memref<1x32xf32, #tpu.memory_space<vmem>>, %arg4: memref<32x128xf32, #tpu.memory_space<vmem>>, %arg5: memref<1x128xf32, #tpu.memory_space<vmem>>, %arg6: memref<16x128xf32, #tpu.memory_space<vmem>>) attributes {dimension_semantics = [#tpu.dimension_semantics<parallel>], iteration_bounds = array<i64: 1>, scalar_prefetch = 0 : i64, scratch_operands = 0 : i64, tpu.core_type = #tpu.core_type<tc>, window_params = [{transform_indices = @transform_0, window_bounds = array<i64: 16, 32>}, {pipeline_mode = #tpu.pipeline_mode<synchronous>, transform_indices = @transform_1, window_bounds = array<i64: 1, 32>}, {pipeline_mode = #tpu.pipeline_mode<synchronous>, transform_indices = @transform_2, window_bounds = array<i64: 1, 32>}, {pipeline_mode = #tpu.pipeline_mode<synchronous>, transform_indices = @transform_3, window_bounds = array<i64: 32, 128>}, {pipeline_mode = #tpu.pipeline_mode<synchronous>, transform_indices = @transform_4, window_bounds = array<i64: 1, 128>}, {transform_indices = @transform_5, window_bounds = array<i64: 16, 128>}]} {
    %c0 = arith.constant 0 : index
    %c0_0 = arith.constant 0 : index
    %0 = vector.load %arg1[%c0, %c0_0] : memref<16x32xf32, #tpu.memory_space<vmem>>, vector<16x32xf32>
    %cst = arith.constant dense<0.000000e+00> : vector<16xf32>
    %1 = vector.multi_reduction <add>, %0, %cst [1] : vector<16x32xf32> to vector<16xf32>
    %2 = vector.shape_cast %1 : vector<16xf32> to vector<16x1xf32>
    %cst_1 = arith.constant 3.200000e+01 : f32
    %3 = vector.broadcast %cst_1 : f32 to vector<16x1xf32>
    %4 = arith.divf %2, %3 : vector<16x1xf32>
    %5 = vector.broadcast %4 : vector<16x1xf32> to vector<16x32xf32>
    %6 = arith.subf %0, %5 : vector<16x32xf32>
    %7 = arith.mulf %6, %6 : vector<16x32xf32>
    %cst_2 = arith.constant dense<0.000000e+00> : vector<16xf32>
    %8 = vector.multi_reduction <add>, %7, %cst_2 [1] : vector<16x32xf32> to vector<16xf32>
    %9 = vector.shape_cast %8 : vector<16xf32> to vector<16x1xf32>
    %cst_3 = arith.constant 3.200000e+01 : f32
    %10 = vector.broadcast %cst_3 : f32 to vector<16x1xf32>
    %11 = arith.divf %9, %10 : vector<16x1xf32>
    %cst_4 = arith.constant 9.99999974E-6 : f32
    %12 = vector.broadcast %cst_4 : f32 to vector<16x1xf32>
    %13 = arith.addf %11, %12 : vector<16x1xf32>
    %14 = math.rsqrt %13 : vector<16x1xf32>
    %15 = vector.broadcast %14 : vector<16x1xf32> to vector<16x32xf32>
    %16 = arith.mulf %6, %15 : vector<16x32xf32>
    %c0_5 = arith.constant 0 : index
    %c0_6 = arith.constant 0 : index
    %17 = vector.load %arg2[%c0_5, %c0_6] : memref<1x32xf32, #tpu.memory_space<vmem>>, vector<1x32xf32>
    %18 = vector.broadcast %17 : vector<1x32xf32> to vector<16x32xf32>
    %19 = arith.mulf %16, %18 : vector<16x32xf32>
    %c0_7 = arith.constant 0 : index
    %c0_8 = arith.constant 0 : index
    %20 = vector.load %arg3[%c0_7, %c0_8] : memref<1x32xf32, #tpu.memory_space<vmem>>, vector<1x32xf32>
    %21 = vector.broadcast %20 : vector<1x32xf32> to vector<16x32xf32>
    %22 = arith.addf %19, %21 : vector<16x32xf32>
    %c0_9 = arith.constant 0 : index
    %c0_10 = arith.constant 0 : index
    %23 = vector.load %arg4[%c0_9, %c0_10] : memref<32x128xf32, #tpu.memory_space<vmem>>, vector<32x128xf32>
    %cst_11 = arith.constant dense<0.000000e+00> : vector<16x128xf32>
    %24 = tpu.matmul %22, %23, %cst_11 {dimension_numbers = #tpu.dot_dimension_numbers<[1], [0], [0], [1], [0, 0, 1, 1], [], []>} : vector<16x32xf32>, vector<32x128xf32>, vector<16x128xf32> -> vector<16x128xf32>
    %c0_12 = arith.constant 0 : index
    %c0_13 = arith.constant 0 : index
    %25 = vector.load %arg5[%c0_12, %c0_13] : memref<1x128xf32, #tpu.memory_space<vmem>>, vector<1x128xf32>
    %26 = vector.broadcast %25 : vector<1x128xf32> to vector<16x128xf32>
    %27 = arith.addf %24, %26 : vector<16x128xf32>
    %c0_14 = arith.constant 0 : index
    %c0_15 = arith.constant 0 : index
    %28 = vector.load %arg6[%c0_14, %c0_15] : memref<16x128xf32, #tpu.memory_space<vmem>>, vector<16x128xf32>
    tpu.vector_store %arg6[%c0_14, %c0_15], %27 {strides = array<i32>} : memref<16x128xf32, #tpu.memory_space<vmem>>, vector<16x128xf32>,
    return
  }
  func.func @transform_0(%arg0: i32) -> (i32, i32) {
    %c0_i32 = arith.constant 0 : i32
    %c0_i32_0 = arith.constant 0 : i32
    return %arg0, %c0_i32 : i32, i32
  }
  func.func @transform_1(%arg0: i32) -> (i32, i32) {
    %c0_i32 = arith.constant 0 : i32
    %c0_i32_0 = arith.constant 0 : i32
    %c0_i32_1 = arith.constant 0 : i32
    return %c0_i32, %c0_i32_0 : i32, i32
  }
  func.func @transform_2(%arg0: i32) -> (i32, i32) {
    %c0_i32 = arith.constant 0 : i32
    %c0_i32_0 = arith.constant 0 : i32
    %c0_i32_1 = arith.constant 0 : i32
    return %c0_i32, %c0_i32_0 : i32, i32
  }
  func.func @transform_3(%arg0: i32) -> (i32, i32) {
    %c0_i32 = arith.constant 0 : i32
    %c0_i32_0 = arith.constant 0 : i32
    %c0_i32_1 = arith.constant 0 : i32
    return %c0_i32, %c0_i32_0 : i32, i32
  }
  func.func @transform_4(%arg0: i32) -> (i32, i32) {
    %c0_i32 = arith.constant 0 : i32
    %c0_i32_0 = arith.constant 0 : i32
    %c0_i32_1 = arith.constant 0 : i32
    return %c0_i32, %c0_i32_0 : i32, i32
  }
  func.func @transform_5(%arg0: i32) -> (i32, i32) {
    %c0_i32 = arith.constant 0 : i32
    %c0_i32_0 = arith.constant 0 : i32
    return %arg0, %c0_i32 : i32, i32
  }
}

</mosaic_0001>

<llo_original>
// kernel: tpu_custom_call.1
$region0: #{tpu_custom_call.1}
  #allocation0 [shape = 'u32[]', space=smem, size = 0x4, offset = 0x4, fixed_abs, tag = 'smem constant byte address 0x4 - core index']
  #allocation1 [shape = 'u32[72,128]{1,0:T(1,128)}', space=vmem, size = 0x9000, scoped, tag = 'internal scratch']
  %s0 = inlined_call_operand.hbm [shape: f32[16,32], index: 0, kind: input, shape index: {}]
  %s1 = inlined_call_operand.hbm [shape: f32[1,32], index: 1, kind: input, shape index: {}]
  %s2 = inlined_call_operand.vmem [shape: f32[1,32], index: 2, kind: input, shape index: {}]
  %s3 = inlined_call_operand.hbm [shape: f32[32,128], index: 3, kind: input, shape index: {}]
  %s4 = inlined_call_operand.vmem [shape: f32[1,128], index: 4, kind: input, shape index: {}]
  %s5 = inlined_call_operand.hbm [shape: f32[16,128], index: 5, kind: output, shape index: {}]
  %s6 = sld [smem:[#allocation0]]
  $region42: #{tpu_custom_call.1} parent=0
    _
  %s8 = ssub.s32 1, %s6
  %s9 = scalar_select 0, %s8, %s6
  $region1: #{tpu_custom_call.1} parent=0
    #allocation2 [shape = 'u8[8192]{0}', space=vmem, size = 0x2000, scoped, tag = 'input window, operand 0, single buffered']
    #allocation3 [shape = 's32[1]{0}', space=sflag, size = 0x4, scoped, tag = 'scoped memory for tpu_custom_call.1']
    #allocation4 [shape = 's32[1]{0}', space=sflag, size = 0x4, scoped, tag = 'scoped memory for tpu_custom_call.1']
    #allocation5 [shape = 'u8[512]{0}', space=vmem, size = 0x400, scoped, tag = 'input window, operand 1, single buffered']
    #allocation6 [shape = 's32[1]{0}', space=sflag, size = 0x4, scoped, tag = 'scoped memory for tpu_custom_call.1']
    #allocation7 [shape = 'u8[16384]{0}', space=vmem, size = 0x4000, scoped, tag = 'input window, operand 3, single buffered']
    #allocation8 [shape = 'u8[8192]{0}', space=vmem, size = 0x2000, scoped, tag = 'output window, operand 0, single buffered']
    %10 = vsyncpa [#allocation3], 0
    %11 = vsyncpa [#allocation6], 0
    %12 = vsyncpa [#allocation4], 0
    // Predicated region
    $region2: #{tpu_custom_call.1} parent=1 // pred_check
      _
    $region3: #{tpu_custom_call.1} parent=1 // pred_check_branch
      %14 = sbr.rel (0) target = $region5
    $region4: #{tpu_custom_call.1} parent=1 // pred_region
      %16 = vsyncadd [#allocation3], 0
      %s17 = sshll.u32 %s0, 4
      %s18 = int_to_ptr.hbm [resolvable:$true] %s17
      %s19 = sshll.u32 [#allocation2], 4
      %s20 = int_to_ptr.vmem [resolvable:$true] %s19
      %25 = dma.hbm_to_vmem [thread:$0]  %s18, 256, %s20, [#allocation3], 128, 128, 8
    $region5: #{tpu_custom_call.1} parent=1 // pred_fallthru
      _
    // Predicated region
    $region6: #{tpu_custom_call.1} parent=1 // pred_check
      _
    $region7: #{tpu_custom_call.1} parent=1 // pred_check_branch
      %27 = sbr.rel (0) target = $region9
    $region8: #{tpu_custom_call.1} parent=1 // pred_region
      %29 = vsyncadd [#allocation6], 0
      %s31 = sshll.u32 %s1, 4
      %s32 = int_to_ptr.hbm [resolvable:$true] %s31
      %s33 = sshll.u32 [#allocation5], 4
      %s34 = int_to_ptr.vmem [resolvable:$true] %s33
      %36 = dma.hbm_to_vmem [thread:$0]  %s32, 16, %s34, [#allocation6]
    $region9: #{tpu_custom_call.1} parent=1 // pred_fallthru
      _
    // Predicated region
    $region10: #{tpu_custom_call.1} parent=1 // pred_check
      _
    $region11: #{tpu_custom_call.1} parent=1 // pred_check_branch
      %38 = sbr.rel (0) target = $region13
    $region12: #{tpu_custom_call.1} parent=1 // pred_region
      _
    $region13: #{tpu_custom_call.1} parent=1 // pred_fallthru
      _
    // Predicated region
    $region14: #{tpu_custom_call.1} parent=1 // pred_check
      _
    $region15: #{tpu_custom_call.1} parent=1 // pred_check_branch
      %40 = sbr.rel (0) target = $region17
    $region16: #{tpu_custom_call.1} parent=1 // pred_region
      %42 = vsyncadd [#allocation6], 0
      %s43 = sshll.u32 %s3, 4
      %s44 = int_to_ptr.hbm [resolvable:$true] %s43
      %s45 = sshll.u32 [#allocation7], 4
      %s46 = int_to_ptr.vmem [resolvable:$true] %s45
      %51 = dma.hbm_to_vmem [thread:$0]  %s44, 512, %s46, [#allocation6], 128, 128, 8
    $region17: #{tpu_custom_call.1} parent=1 // pred_fallthru
      _
    // Predicated region
    $region18: #{tpu_custom_call.1} parent=1 // pred_check
      _
    $region19: #{tpu_custom_call.1} parent=1 // pred_check_branch
      %53 = sbr.rel (0) target = $region21
    $region20: #{tpu_custom_call.1} parent=1 // pred_region
      _
    $region21: #{tpu_custom_call.1} parent=1 // pred_fallthru
      _
    // Predicated region
    $region22: #{tpu_custom_call.1} parent=1 // pred_check
      _
    $region23: #{tpu_custom_call.1} parent=1 // pred_check_branch
      %55 = sbr.rel (0) target = $region25
    $region24: #{tpu_custom_call.1} parent=1 // pred_region
      %57 = dma.done [#allocation3], 256
    $region25: #{tpu_custom_call.1} parent=1 // pred_fallthru
      _
    // Predicated region
    $region26: #{tpu_custom_call.1} parent=1 // pred_check
      _
    $region27: #{tpu_custom_call.1} parent=1 // pred_check_branch
      %59 = sbr.rel (0) target = $region29
    $region28: #{tpu_custom_call.1} parent=1 // pred_region
      %61 = dma.done [#allocation6], 16
    $region29: #{tpu_custom_call.1} parent=1 // pred_fallthru
      _
    // Predicated region
    $region30: #{tpu_custom_call.1} parent=1 // pred_check
      _
    $region31: #{tpu_custom_call.1} parent=1 // pred_check_branch
      %63 = sbr.rel (0) target = $region33
    $region32: #{tpu_custom_call.1} parent=1 // pred_region
      %65 = dma.done [#allocation6], 512
    $region33: #{tpu_custom_call.1} parent=1 // pred_fallthru
      _
    %v66 = vld [vmem:[#allocation2] sm:$0xff]
    %v67 = vld [vmem:[#allocation2 + $0x8] sm:$0xff]
    %vm68 = vcmask 261120
    %v69 = vsel %vm68, %v66, 0.0
    %70 = vadd.xlane.f32.xlu0 %v69
    %v71 = vpop.xlane.xlu0 %70
    %v72 = vsel %vm68, %v67, 0.0
    %73 = vadd.xlane.f32.xlu0 %v72
    %v74 = vpop.xlane.xlu0 %73
    %v75 = vrcp.pop 32.0
    %v76 = vmul.f32 32.0, %v75
    %v77 = vsub.f32 1.0, %v76
    %v78 = vmul.f32 %v75, %v77
    %v79 = vadd.f32 %v75, %v78
    %vm80 = vweird.f32 %v75
    %v81 = vsel %vm80, %v75, %v79
    %v82 = vmul.f32 %v71, %v81
    %v83 = vmul.f32 %v74, %v81
    %v84 = vsub.f32 %v66, %v82
    %v85 = vsub.f32 %v67, %v83
    %v86 = vmul.f32 %v84, %v84
    %v87 = vmul.f32 %v85, %v85
    %v88 = vsel %vm68, %v86, 0.0
    %89 = vadd.xlane.f32.xlu0 %v88
    %v90 = vpop.xlane.xlu0 %89
    %v91 = vsel %vm68, %v87, 0.0
    %92 = vadd.xlane.f32.xlu0 %v91
    %v93 = vpop.xlane.xlu0 %92
    %v94 = vmul.f32 %v90, %v81
    %v95 = vmul.f32 %v93, %v81
    %v96 = vadd.f32 %v94, 1e-05
    %v97 = vadd.f32 %v95, 1e-05
    %v98 = vrsqrt.pop %v96
    %v99 = vmul.f32 %v98, %v96
    %v100 = vmul.f32 %v99, %v98
    %v101 = vmul.f32 0.5, %v100
    %v102 = vsub.f32 1.5, %v101
    %v103 = vmul.f32 %v98, %v102
    %vm104 = vweird.f32 %v96
    %vm105 = vweird.f32 %v98
    %vm106 = vmor %vm104, %vm105
    %v107 = vsel %vm106, %v98, %v103
    %v108 = vrsqrt.pop %v97
    %v109 = vmul.f32 %v108, %v97
    %v110 = vmul.f32 %v109, %v108
    %v111 = vmul.f32 0.5, %v110
    %v112 = vsub.f32 1.5, %v111
    %v113 = vmul.f32 %v108, %v112
    %vm114 = vweird.f32 %v97
    %vm115 = vweird.f32 %v108
    %vm116 = vmor %vm114, %vm115
    %v117 = vsel %vm116, %v108, %v113
    %v118 = vmul.f32 %v84, %v107
    %v119 = vmul.f32 %v85, %v117
    %v120 = vld [vmem:[#allocation5] sm:$0x1]
    %v122 = vperm.slane %v120, 0
    %v124 = vmul.f32 %v118, %v122
    %v125 = vmul.f32 %v119, %v122
    %v126 = vld [vmem:[%s2] sm:$0x1]
    %v128 = vperm.slane %v126, 0
    %v130 = vadd.f32 %v124, %v128
    %v131 = vadd.f32 %v125, %v128
    %v132 = vld [vmem:[#allocation7] sm:$0xff]
    %v133 = vld [vmem:[#allocation7 + $0x8] sm:$0xff]
    %v134 = vld [vmem:[#allocation7 + $0x10] sm:$0xff]
    %v135 = vld [vmem:[#allocation7 + $0x18] sm:$0xff]
    %v136 = vld [vmem:[%s4] sm:$0x1]
    %v138 = vperm.slane %v136, 0
    %v141 = vsel %vm68, %v130, 0
    %v144 = vsel %vm68, %v131, 0
    %146 = vmatpush.msra.mxu0 0.0
    %147 = vmatpush.msra.mxu0 0.0
    %148 = vmatpush.msra.mxu0 0.0
    %149 = vmatpush.msra.mxu0 0.0
    %150 = vmatpush.msra.mxu0 0.0
    %151 = vmatpush.msra.mxu0 0.0
    %152 = vmatpush.msra.mxu0 0.0
    %153 = vmatpush.msra.mxu0 0.0
    %154 = vmatpush.msra.mxu0 0.0
    %155 = vmatpush.msra.mxu0 0.0
    %156 = vmatpush.msra.mxu0 0.0
    %157 = vmatpush.msra.mxu0 0.0
    %158 = vmatpush.msra.mxu0 %v135
    %159 = vmatpush.msra.mxu0 %v134
    %160 = vmatpush.msra.mxu0 %v133
    %161 = vmatpush.msra.mxu0 %v132
    %162 = vmatmul.f32.gmra.mxu0 %v141
    %v163 = vpop.f32.mrf.mxu0
    %v164 = vadd.f32 %v138, %v163
    %165 = vmatmul.f32.gmra.mxu0 %v144
    %v166 = vpop.f32.mrf.mxu0
    %v167 = vadd.f32 %v138, %v166
    %168 = vdwg.mxu0
    %169 = vst [vmem:[#allocation8] sm:$0xff] %v164
    %170 = vst [vmem:[#allocation8 + $0x8] sm:$0xff] %v167
    // Predicated region
    $region34: #{tpu_custom_call.1} parent=1 // pred_check
      _
    $region35: #{tpu_custom_call.1} parent=1 // pred_check_branch
      %172 = sbr.rel (0) target = $region37
    $region36: #{tpu_custom_call.1} parent=1 // pred_region
      %174 = vsyncadd [#allocation4], 0
      %s175 = sshll.u32 [#allocation8], 4
      %s176 = int_to_ptr.vmem [resolvable:$true] %s175
      %s177 = sshll.u32 %s5, 4
      %s178 = int_to_ptr.hbm [resolvable:$true] %s177
      %183 = dma.vmem_to_hbm [thread:$0]  %s176, 256, %s178, [#allocation4], 128, 128, 8
    $region37: #{tpu_custom_call.1} parent=1 // pred_fallthru
      _
    // Predicated region
    $region38: #{tpu_custom_call.1} parent=1 // pred_check
      _
    $region39: #{tpu_custom_call.1} parent=1 // pred_check_branch
      %185 = sbr.rel (0) target = $region41
    $region40: #{tpu_custom_call.1} parent=1 // pred_region
      %187 = dma.done [#allocation4], 256
    $region41: #{tpu_custom_call.1} parent=1 // pred_fallthru
      _
    %188 = vsyncpa [#allocation3], 1
    %189 = vsyncpa [#allocation6], 1
    %190 = vsyncpa [#allocation4], 1

</llo_original>
